<compile_context>
chip_gen: v5e
topology: v5e:2x2
jax: 0.10.0
libtpu: 0.0.40
codegen_flags: <defaults>
</compile_context>

<pallas_src>
import functools

import jax
import jax.numpy as jnp
import numpy as np
from jax.experimental import pallas as pl
from jax.experimental.pallas import tpu as pltpu


def _proj_kernel(x_ref, w_ref, b_ref, ai_ref, aj_ref,
                 h_ref, hbf_ref, si_ref, sj_ref):
    # h = x @ W + b  (nn.Linear; dropout p=0 -> identity), plus per-head score
    # halves s_i = h @ Ai, s_j = h @ Aj (Ai/Aj are block-diagonal per-head maps).
    h = jnp.dot(x_ref[...], w_ref[...],
                preferred_element_type=jnp.float32) + b_ref[...]
    h_ref[...] = h
    hbf_ref[...] = h.astype(jnp.bfloat16)
    si_ref[...] = jnp.dot(h, ai_ref[...], preferred_element_type=jnp.float32)
    sj_ref[...] = jnp.dot(h, aj_ref[...], preferred_element_type=jnp.float32)


def _gat_kernel(tgt_ref, hj_ref, sjT_ref, si_ref, h_ref, o_ref,
                m_sc, l_sc, acc_sc, *,
                num_heads, head_dim, node_tile, negative_slope,
                add_skip, apply_act):
    f32 = jnp.float32
    bf16 = jnp.bfloat16
    # -1e30 sentinel for masked scores / initial running max; assumes real
    # attention logits never approach ~1e30 in magnitude.
    NEG = -1e30

    i = pl.program_id(0)              # node tile (parallel)
    k = pl.program_id(1)              # edge tile (reduction, iterated last)
    n_k = pl.num_programs(1)

    # --- init running softmax state (per node tile) ---------------------------
    @pl.when(k == 0)
    def _init():
        m_sc[...] = jnp.full_like(m_sc, NEG)
        l_sc[...] = jnp.zeros_like(l_sc)
        acc_sc[...] = jnp.zeros_like(acc_sc)

    te = tgt_ref.shape[1]
    # membership mask: edge e of this tile targets row r of this node tile?
    row_ids = (jax.lax.broadcasted_iota(jnp.int32, (node_tile, te), 0)
               + i * node_tile)
    tmask = row_ids == tgt_ref[...]           # (TN, TE); padded edges (tgt=-1) -> False

    hj = hj_ref[...]                          # (TE, HD) bf16 pre-gathered source feats
    s_i = si_ref[...]                         # (TN, H)  f32 target-side score half
    s_jT = sjT_ref[...]                       # (H, TE)  f32 source-side score half

    m_old = m_sc[...]
    l_old = l_sc[...]
    acc_old = acc_sc[...]

    m_cols, l_cols, acc_cols = [], [], []
    for hh in range(num_heads):               # short static loop; 2-D lane-dense temps
        lo = hh * head_dim
        hi = lo + head_dim
        raw = s_i[:, hh:hh + 1] + s_jT[hh:hh + 1, :]             # (TN, TE)
        raw = jnp.where(raw >= 0, raw, negative_slope * raw)     # LeakyReLU
        s_msk = jnp.where(tmask, raw, NEG)

        m_o = m_old[:, hh:hh + 1]                                # (TN, 1)
        m_n = jnp.maximum(m_o, jnp.max(s_msk, axis=1, keepdims=True))
        # exp of the *masked* score keeps everything finite (masked lanes
        # underflow to 0 and are discarded by the select anyway).
        p = jnp.where(tmask, jnp.exp(s_msk - m_n), 0.0)          # (TN, TE)
        corr = jnp.exp(m_o - m_n)                                # (TN, 1)
        l_n = corr * l_old[:, hh:hh + 1] + jnp.sum(p, axis=1, keepdims=True)
        acc_n = corr * acc_old[:, lo:hi] + jnp.dot(
            p.astype(bf16), hj[:, lo:hi], preferred_element_type=f32)

        m_cols.append(m_n)
        l_cols.append(l_n)
        acc_cols.append(acc_n)

    # one full-width lane-dense store per scratch buffer (no masked column vst)
    m_sc[...] = jnp.concatenate(m_cols, axis=1)
    l_sc[...] = jnp.concatenate(l_cols, axis=1)
    acc_sc[...] = jnp.concatenate(acc_cols, axis=1)

    # --- finalize: normalize, skip connection, optional ELU -------------------
    @pl.when(k == n_k - 1)
    def _finalize():
        l = l_sc[...]
        inv = 1.0 / jnp.where(l > 0, l, 1.0)   # exact; once per node tile; isolated nodes -> 0
        acc = acc_sc[...]
        h_node = h_ref[...]                    # f32 node-tile features, loaded only here
        cols = []
        for hh in range(num_heads):
            lo = hh * head_dim
            hi = lo + head_dim
            o_h = acc[:, lo:hi] * inv[:, hh:hh + 1]
            if add_skip:
                o_h = o_h + h_node[:, lo:hi]
            if apply_act:
                # ELU(alpha=1); clamp before exp so EUP never overflows
                o_h = jnp.where(o_h > 0, o_h,
                                jnp.exp(jnp.minimum(o_h, 0.0)) - 1.0)
            cols.append(o_h)
        o_ref[...] = jnp.concatenate(cols, axis=1)     # single (TN, HD) store


def multi_head_gat_forward(node_features, edge_index, params, *,
                           num_heads, n_hidden, negative_slope=0.2,
                           add_skip_connection=True, apply_act=False,
                           concat=True, node_tile=128, edge_tile=128):
    N, F = node_features.shape
    E = edge_index.shape[1]
    H, D = num_heads, n_hidden
    HD = H * D

    TN, TE = node_tile, edge_tile
    n_pad = ((N + TN - 1) // TN) * TN
    e_pad = ((E + TE - 1) // TE) * TE

    x = jnp.pad(jnp.asarray(node_features, jnp.float32), ((0, n_pad - N), (0, 0)))

    w = jnp.asarray(params["w"], jnp.float32)                   # (F, H*D)
    b = jnp.asarray(params["b"], jnp.float32).reshape(1, HD)    # (1, H*D)
    attn = jnp.asarray(params["attn"], jnp.float32)             # (1, H, 2*D)
    attn_i, attn_j = attn[0, :, :D], attn[0, :, D:]
    eye = jnp.eye(H, dtype=jnp.float32)
    # block-diagonal per-head projections: Ai[h*D+d, h'] = attn_i[h,d] * delta(h,h')
    ai = (attn_i[:, :, None] * eye[:, None, :]).reshape(HD, H)
    aj = (attn_j[:, :, None] * eye[:, None, :]).reshape(HD, H)

    # ---- kernel 1: projection + score halves ---------------------------------
    n_tiles = n_pad // TN
    h, h_bf, s_i_all, s_j_all = pl.pallas_call(
        _proj_kernel,
        out_shape=(jax.ShapeDtypeStruct((n_pad, HD), jnp.float32),
                   jax.ShapeDtypeStruct((n_pad, HD), jnp.bfloat16),
                   jax.ShapeDtypeStruct((n_pad, H), jnp.float32),
                   jax.ShapeDtypeStruct((n_pad, H), jnp.float32)),
        grid_spec=pltpu.PrefetchScalarGridSpec(
            num_scalar_prefetch=0,
            grid=(n_tiles,),
            in_specs=[pl.BlockSpec((TN, F), lambda i: (i, 0)),
                      pl.BlockSpec((F, HD), lambda i: (0, 0)),
                      pl.BlockSpec((1, HD), lambda i: (0, 0)),
                      pl.BlockSpec((HD, H), lambda i: (0, 0)),
                      pl.BlockSpec((HD, H), lambda i: (0, 0))],
            out_specs=(pl.BlockSpec((TN, HD), lambda i: (i, 0)),
                       pl.BlockSpec((TN, HD), lambda i: (i, 0)),
                       pl.BlockSpec((TN, H), lambda i: (i, 0)),
                       pl.BlockSpec((TN, H), lambda i: (i, 0)))),
        compiler_params=pltpu.CompilerParams(
            dimension_semantics=("parallel",)),
    )(x, w, b, ai, aj)

    # ---- edge-level gathers (plain XLA; replaces the dense one-hot matmuls) --
    tgt = edge_index[0].astype(jnp.int32)
    src = edge_index[1].astype(jnp.int32)
    src_p = jnp.pad(src, (0, e_pad - E))                          # pad with valid index 0
    tgt_p = jnp.pad(tgt, (0, e_pad - E), constant_values=-1)      # -1 never matches a node
    hj = jnp.take(h_bf, src_p, axis=0)                            # (e_pad, HD) bf16
    sjT = jnp.take(s_j_all, src_p, axis=0).T                      # (H, e_pad) f32
    tgt2d = tgt_p.reshape(1, e_pad)                               # (1, e_pad) int32

    # ---- kernel 2: grouped softmax attention + aggregation -------------------
    kernel = functools.partial(
        _gat_kernel, num_heads=H, head_dim=D, node_tile=TN,
        negative_slope=negative_slope, add_skip=add_skip_connection,
        apply_act=(apply_act and concat))

    out = pl.pallas_call(
        kernel,
        out_shape=jax.ShapeDtypeStruct((n_pad, HD), jnp.float32),
        grid_spec=pltpu.PrefetchScalarGridSpec(
            num_scalar_prefetch=0,
            grid=(n_pad // TN, e_pad // TE),          # edge (reduction) axis last
            in_specs=[
                pl.BlockSpec((1, TE), lambda i, k: (0, k)),     # target ids (edge tile)
                pl.BlockSpec((TE, HD), lambda i, k: (k, 0)),    # gathered source feats bf16
                pl.BlockSpec((H, TE), lambda i, k: (0, k)),     # source score half
                pl.BlockSpec((TN, H), lambda i, k: (i, 0)),     # target score half (per tile)
                pl.BlockSpec((TN, HD), lambda i, k: (i, 0)),    # h f32 (skip connection)
            ],
            out_specs=pl.BlockSpec((TN, HD), lambda i, k: (i, 0)),
            scratch_shapes=[pltpu.VMEM((TN, H), jnp.float32),   # running max
                            pltpu.VMEM((TN, H), jnp.float32),   # running denom
                            pltpu.VMEM((TN, HD), jnp.float32)]),  # running weighted sum
        compiler_params=pltpu.CompilerParams(
            dimension_semantics=("parallel", "arbitrary"),
            # per-step blocks are only O(TE*HD + TN*HD) now; 32 MiB is ample on
            # every generation (fits the 64 MiB v7x budget, raises v5e's 16 MiB default)
            vmem_limit_bytes=32 * 1024 * 1024),
    )(tgt2d, hj, sjT, s_i_all, h)

    out = out[:N]
    if not concat:
        # average over heads (reshape/mean glue); ELU after the mean, as in torch
        out = out.reshape(N, H, D).mean(axis=1)
        if apply_act:
            out = jnp.where(out > 0, out, jnp.expm1(out))
    return out


def _reference(node_features, edge_index, params, *, H, D, slope,
               add_skip, apply_act, concat):
    """Pure-JAX re-implementation of the PyTorch forward (for validation)."""
    N = node_features.shape[0]
    h = node_features @ params["w"] + params["b"]
    h3 = h.reshape(N, H, D)
    tgt, src = edge_index[0], edge_index[1]
    h_i, h_j = h3[tgt], h3[src]
    hc = jnp.concatenate([h_i, h_j], axis=-1)
    e = (hc * params["attn"]).sum(-1)
    e = jnp.where(e >= 0, e, slope * e)
    m = jax.ops.segment_max(e, tgt, num_segments=N)
    ex = jnp.exp(e - m[tgt])
    den = jax.ops.segment_sum(ex, tgt, num_segments=N)
    alpha = ex / den[tgt]
    msg = alpha[:, :, None] * h_j
    out = jax.ops.segment_sum(msg, tgt, num_segments=N)
    if add_skip:
        out = out + h3
    out = out.reshape(N, H * D) if concat else out.mean(axis=1)
    if apply_act:
        out = jnp.where(out > 0, out, jnp.exp(out) - 1.0)
    return out


if __name__ == "__main__":
    # small deterministic example: 50 nodes, 24 features, 4 heads x 32 hidden, 300 edges
    N, F, H, D, E = 50, 24, 4, 32, 300
    SLOPE = 0.2

    key = jax.random.PRNGKey(0)
    k_w, k_b, k_a, k_t, k_s, k_x = jax.random.split(key, 6)

    lim_w = float(np.sqrt(6.0 / (F + H * D)))
    w = jax.random.uniform(k_w, (F, H * D), jnp.float32, -lim_w, lim_w)
    lim_b = float(1.0 / np.sqrt(F))
    b = jax.random.uniform(k_b, (H * D,), jnp.float32, -lim_b, lim_b)
    lim_a = float(np.sqrt(6.0 / (H + 2 * D)))
    attn = jax.random.uniform(k_a, (1, H, 2 * D), jnp.float32, -lim_a, lim_a)
    params = {"w": w, "b": b, "attn": attn}

    node_features = jax.random.normal(k_x, (N, F), jnp.float32)
    tgt = jax.random.randint(k_t, (E,), 0, N, dtype=jnp.int32)
    src = jax.random.randint(k_s, (E,), 0, N, dtype=jnp.int32)
    edge_index = jnp.stack([tgt, src], axis=0)                    # (2, E)

    out = multi_head_gat_forward(
        node_features, edge_index, params,
        num_heads=H, n_hidden=D, negative_slope=SLOPE,
        add_skip_connection=True, apply_act=False, concat=True)
    out = jax.block_until_ready(out)

    ref = _reference(node_features, edge_index, params, H=H, D=D, slope=SLOPE,
                     add_skip=True, apply_act=False, concat=True)
    # bf16 source features / bf16 aggregation matmul -> loosened tolerance vs f32 ref
    np.testing.assert_allclose(np.asarray(out), np.asarray(ref),
                               rtol=2e-2, atol=2e-2)
    print("KERNEL_OK")
</pallas_src>

<mosaic_0001>
module attributes {stable_mosaic.version = 11 : i64} {
  func.func @_proj_kernel(%arg0: i32, %arg1: memref<128x24xf32, #tpu.memory_space<vmem>>, %arg2: memref<24x128xf32, #tpu.memory_space<vmem>>, %arg3: memref<1x128xf32, #tpu.memory_space<vmem>>, %arg4: memref<128x4xf32, #tpu.memory_space<vmem>>, %arg5: memref<128x4xf32, #tpu.memory_space<vmem>>, %arg6: memref<128x128xf32, #tpu.memory_space<vmem>>, %arg7: memref<128x128xbf16, #tpu.memory_space<vmem>>, %arg8: memref<128x4xf32, #tpu.memory_space<vmem>>, %arg9: memref<128x4xf32, #tpu.memory_space<vmem>>) attributes {dimension_semantics = [#tpu.dimension_semantics<parallel>], iteration_bounds = array<i64: 1>, scalar_prefetch = 0 : i64, scratch_operands = 0 : i64, tpu.core_type = #tpu.core_type<tc>, window_params = [{transform_indices = @transform_0, window_bounds = array<i64: 128, 24>}, {pipeline_mode = #tpu.pipeline_mode<synchronous>, transform_indices = @transform_1, window_bounds = array<i64: 24, 128>}, {pipeline_mode = #tpu.pipeline_mode<synchronous>, transform_indices = @transform_2, window_bounds = array<i64: 1, 128>}, {pipeline_mode = #tpu.pipeline_mode<synchronous>, transform_indices = @transform_3, window_bounds = array<i64: 128, 4>}, {pipeline_mode = #tpu.pipeline_mode<synchronous>, transform_indices = @transform_4, window_bounds = array<i64: 128, 4>}, {transform_indices = @transform_5, window_bounds = array<i64: 128, 128>}, {transform_indices = @transform_6, window_bounds = array<i64: 128, 128>}, {transform_indices = @transform_7, window_bounds = array<i64: 128, 4>}, {transform_indices = @transform_8, window_bounds = array<i64: 128, 4>}]} {
    %c0 = arith.constant 0 : index
    %c0_0 = arith.constant 0 : index
    %0 = vector.load %arg1[%c0, %c0_0] : memref<128x24xf32, #tpu.memory_space<vmem>>, vector<128x24xf32>
    %c0_1 = arith.constant 0 : index
    %c0_2 = arith.constant 0 : index
    %1 = vector.load %arg2[%c0_1, %c0_2] : memref<24x128xf32, #tpu.memory_space<vmem>>, vector<24x128xf32>
    %cst = arith.constant dense<0.000000e+00> : vector<128x128xf32>
    %2 = tpu.matmul %0, %1, %cst {dimension_numbers = #tpu.dot_dimension_numbers<[1], [0], [0], [1], [0, 0, 1, 1], [], []>} : vector<128x24xf32>, vector<24x128xf32>, vector<128x128xf32> -> vector<128x128xf32>
    %c0_3 = arith.constant 0 : index
    %c0_4 = arith.constant 0 : index
    %3 = vector.load %arg3[%c0_3, %c0_4] : memref<1x128xf32, #tpu.memory_space<vmem>>, vector<1x128xf32>
    %4 = vector.broadcast %3 : vector<1x128xf32> to vector<128x128xf32>
    %5 = arith.addf %2, %4 : vector<128x128xf32>
    %c0_5 = arith.constant 0 : index
    %c0_6 = arith.constant 0 : index
    %6 = vector.load %arg6[%c0_5, %c0_6] : memref<128x128xf32, #tpu.memory_space<vmem>>, vector<128x128xf32>
    tpu.vector_store %arg6[%c0_5, %c0_6], %5 {strides = array<i32>} : memref<128x128xf32, #tpu.memory_space<vmem>>, vector<128x128xf32>,
    %7 = arith.truncf %5 : vector<128x128xf32> to vector<128x128xbf16>
    %c0_7 = arith.constant 0 : index
    %c0_8 = arith.constant 0 : index
    %8 = vector.load %arg7[%c0_7, %c0_8] : memref<128x128xbf16, #tpu.memory_space<vmem>>, vector<128x128xbf16>
    tpu.vector_store %arg7[%c0_7, %c0_8], %7 {strides = array<i32>} : memref<128x128xbf16, #tpu.memory_space<vmem>>, vector<128x128xbf16>,
    %c0_9 = arith.constant 0 : index
    %c0_10 = arith.constant 0 : index
    %9 = vector.load %arg4[%c0_9, %c0_10] : memref<128x4xf32, #tpu.memory_space<vmem>>, vector<128x4xf32>
    %cst_11 = arith.constant dense<0.000000e+00> : vector<128x4xf32>
    %10 = tpu.matmul %5, %9, %cst_11 {dimension_numbers = #tpu.dot_dimension_numbers<[1], [0], [0], [1], [0, 0, 1, 1], [], []>} : vector<128x128xf32>, vector<128x4xf32>, vector<128x4xf32> -> vector<128x4xf32>
    %c0_12 = arith.constant 0 : index
    %c0_13 = arith.constant 0 : index
    %11 = vector.load %arg8[%c0_12, %c0_13] : memref<128x4xf32, #tpu.memory_space<vmem>>, vector<128x4xf32>
    tpu.vector_store %arg8[%c0_12, %c0_13], %10 {strides = array<i32>} : memref<128x4xf32, #tpu.memory_space<vmem>>, vector<128x4xf32>,
    %c0_14 = arith.constant 0 : index
    %c0_15 = arith.constant 0 : index
    %12 = vector.load %arg5[%c0_14, %c0_15] : memref<128x4xf32, #tpu.memory_space<vmem>>, vector<128x4xf32>
    %cst_16 = arith.constant dense<0.000000e+00> : vector<128x4xf32>
    %13 = tpu.matmul %5, %12, %cst_16 {dimension_numbers = #tpu.dot_dimension_numbers<[1], [0], [0], [1], [0, 0, 1, 1], [], []>} : vector<128x128xf32>, vector<128x4xf32>, vector<128x4xf32> -> vector<128x4xf32>
    %c0_17 = arith.constant 0 : index
    %c0_18 = arith.constant 0 : index
    %14 = vector.load %arg9[%c0_17, %c0_18] : memref<128x4xf32, #tpu.memory_space<vmem>>, vector<128x4xf32>
    tpu.vector_store %arg9[%c0_17, %c0_18], %13 {strides = array<i32>} : memref<128x4xf32, #tpu.memory_space<vmem>>, vector<128x4xf32>,
    return
  }
  func.func @transform_0(%arg0: i32) -> (i32, i32) {
    %c0_i32 = arith.constant 0 : i32
    %c0_i32_0 = arith.constant 0 : i32
    return %arg0, %c0_i32 : i32, i32
  }
  func.func @transform_1(%arg0: i32) -> (i32, i32) {
    %c0_i32 = arith.constant 0 : i32
    %c0_i32_0 = arith.constant 0 : i32
    %c0_i32_1 = arith.constant 0 : i32
    return %c0_i32, %c0_i32_0 : i32, i32
  }
  func.func @transform_2(%arg0: i32) -> (i32, i32) {
    %c0_i32 = arith.constant 0 : i32
    %c0_i32_0 = arith.constant 0 : i32
    %c0_i32_1 = arith.constant 0 : i32
    return %c0_i32, %c0_i32_0 : i32, i32
  }
  func.func @transform_3(%arg0: i32) -> (i32, i32) {
    %c0_i32 = arith.constant 0 : i32
    %c0_i32_0 = arith.constant 0 : i32
    %c0_i32_1 = arith.constant 0 : i32
    return %c0_i32, %c0_i32_0 : i32, i32
  }
  func.func @transform_4(%arg0: i32) -> (i32, i32) {
    %c0_i32 = arith.constant 0 : i32
    %c0_i32_0 = arith.constant 0 : i32
    %c0_i32_1 = arith.constant 0 : i32
    return %c0_i32, %c0_i32_0 : i32, i32
  }
  func.func @transform_5(%arg0: i32) -> (i32, i32) {
    %c0_i32 = arith.constant 0 : i32
    %c0_i32_0 = arith.constant 0 : i32
    return %arg0, %c0_i32 : i32, i32
  }
  func.func @transform_6(%arg0: i32) -> (i32, i32) {
    %c0_i32 = arith.constant 0 : i32
    %c0_i32_0 = arith.constant 0 : i32
    return %arg0, %c0_i32 : i32, i32
  }
  func.func @transform_7(%arg0: i32) -> (i32, i32) {
    %c0_i32 = arith.constant 0 : i32
    %c0_i32_0 = arith.constant 0 : i32
    return %arg0, %c0_i32 : i32, i32
  }
  func.func @transform_8(%arg0: i32) -> (i32, i32) {
    %c0_i32 = arith.constant 0 : i32
    %c0_i32_0 = arith.constant 0 : i32
    return %arg0, %c0_i32 : i32, i32
  }
}

</mosaic_0001>

<llo_original>
// kernel: tpu_custom_call.1
$region0: #{tpu_custom_call.1}
  #allocation0 [shape = 'u32[]', space=smem, size = 0x4, offset = 0x4, fixed_abs, tag = 'smem constant byte address 0x4 - core index']
  #allocation1 [shape = 'u32[72,128]{1,0:T(1,128)}', space=vmem, size = 0x9000, scoped, tag = 'internal scratch']
  %s0 = inlined_call_operand.vmem [shape: f32[128,24], index: 0, kind: input, shape index: {}]
  %s1 = inlined_call_operand.vmem [shape: f32[24,128], index: 1, kind: input, shape index: {}]
  %s2 = inlined_call_operand.vmem [shape: f32[1,128], index: 2, kind: input, shape index: {}]
  %s3 = inlined_call_operand.vmem [shape: f32[128,4], index: 3, kind: input, shape index: {}]
  %s4 = inlined_call_operand.vmem [shape: f32[128,4], index: 4, kind: input, shape index: {}]
  %s5 = inlined_call_operand.hbm [shape: f32[128,128], index: 5, kind: output, shape index: {0}]
  %s6 = inlined_call_operand.hbm [shape: bf16[128,128], index: 6, kind: output, shape index: {1}]
  %s7 = inlined_call_operand.vmem [shape: f32[128,4], index: 7, kind: output, shape index: {2}]
  %s8 = inlined_call_operand.vmem [shape: f32[128,4], index: 8, kind: output, shape index: {3}]
  %9 = xla_tuple %s5, %s6, %s7, %s8
  %s10 = sld [smem:[#allocation0]]
  $region54: #{tpu_custom_call.1} parent=0
    _
  %s12 = ssub.s32 1, %s10
  %s13 = scalar_select 0, %s12, %s10
  $region1: #{tpu_custom_call.1} parent=0
    #allocation2 [shape = 'u8[65536]{0}', space=vmem, size = 0x10000, scoped, tag = 'output window, operand 0, single buffered']
    #allocation3 [shape = 's32[1]{0}', space=sflag, size = 0x4, scoped, tag = 'scoped memory for tpu_custom_call.1']
    #allocation4 [shape = 'u8[32768]{0}', space=vmem, size = 0x8000, scoped, tag = 'output window, operand 1, single buffered']
    #allocation5 [shape = 's32[1]{0}', space=sflag, size = 0x4, scoped, tag = 'scoped memory for tpu_custom_call.1']
    %14 = vsyncpa [#allocation3], 0
    %15 = vsyncpa [#allocation5], 0
    // Predicated region
    $region2: #{tpu_custom_call.1} parent=1 // pred_check
      _
    $region3: #{tpu_custom_call.1} parent=1 // pred_check_branch
      %17 = sbr.rel (0) target = $region5
    $region4: #{tpu_custom_call.1} parent=1 // pred_region
      _
    $region5: #{tpu_custom_call.1} parent=1 // pred_fallthru
      _
    // Predicated region
    $region6: #{tpu_custom_call.1} parent=1 // pred_check
      _
    $region7: #{tpu_custom_call.1} parent=1 // pred_check_branch
      %19 = sbr.rel (0) target = $region9
    $region8: #{tpu_custom_call.1} parent=1 // pred_region
      _
    $region9: #{tpu_custom_call.1} parent=1 // pred_fallthru
      _
    // Predicated region
    $region10: #{tpu_custom_call.1} parent=1 // pred_check
      _
    $region11: #{tpu_custom_call.1} parent=1 // pred_check_branch
      %21 = sbr.rel (0) target = $region13
    $region12: #{tpu_custom_call.1} parent=1 // pred_region
      _
    $region13: #{tpu_custom_call.1} parent=1 // pred_fallthru
      _
    // Predicated region
    $region14: #{tpu_custom_call.1} parent=1 // pred_check
      _
    $region15: #{tpu_custom_call.1} parent=1 // pred_check_branch
      %23 = sbr.rel (0) target = $region17
    $region16: #{tpu_custom_call.1} parent=1 // pred_region
      _
    $region17: #{tpu_custom_call.1} parent=1 // pred_fallthru
      _
    // Predicated region
    $region18: #{tpu_custom_call.1} parent=1 // pred_check
      _
    $region19: #{tpu_custom_call.1} parent=1 // pred_check_branch
      %25 = sbr.rel (0) target = $region21
    $region20: #{tpu_custom_call.1} parent=1 // pred_region
      _
    $region21: #{tpu_custom_call.1} parent=1 // pred_fallthru
      _
    %v26 = vld [vmem:[%s0] sm:$0xff]
    %v27 = vld [vmem:[%s0 + $0x8] sm:$0xff]
    %v28 = vld [vmem:[%s0 + $0x10] sm:$0xff]
    %v29 = vld [vmem:[%s0 + $0x18] sm:$0xff]
    %v30 = vld [vmem:[%s0 + $0x20] sm:$0xff]
    %v31 = vld [vmem:[%s0 + $0x28] sm:$0xff]
    %v32 = vld [vmem:[%s0 + $0x30] sm:$0xff]
    %v33 = vld [vmem:[%s0 + $0x38] sm:$0xff]
    %v34 = vld [vmem:[%s0 + $0x40] sm:$0xff]
    %v35 = vld [vmem:[%s0 + $0x48] sm:$0xff]
    %v36 = vld [vmem:[%s0 + $0x50] sm:$0xff]
    %v37 = vld [vmem:[%s0 + $0x58] sm:$0xff]
    %v38 = vld [vmem:[%s0 + $0x60] sm:$0xff]
    %v39 = vld [vmem:[%s0 + $0x68] sm:$0xff]
    %v40 = vld [vmem:[%s0 + $0x70] sm:$0xff]
    %v41 = vld [vmem:[%s0 + $0x78] sm:$0xff]
    %v42 = vld [vmem:[%s1] sm:$0xff]
    %v43 = vld [vmem:[%s1 + $0x8] sm:$0xff]
    %v44 = vld [vmem:[%s1 + $0x10] sm:$0xff]
    %v45 = vld [vmem:[%s2] sm:$0x1]
    %v47 = vperm.slane %v45, 0
    %vm49 = vcmask 195584
    %v51 = vsel %vm49, %v26, 0
    %v54 = vsel %vm49, %v27, 0
    %v57 = vsel %vm49, %v28, 0
    %v60 = vsel %vm49, %v29, 0
    %v63 = vsel %vm49, %v30, 0
    %v66 = vsel %vm49, %v31, 0
    %v69 = vsel %vm49, %v32, 0
    %v72 = vsel %vm49, %v33, 0
    %v75 = vsel %vm49, %v34, 0
    %v78 = vsel %vm49, %v35, 0
    %v81 = vsel %vm49, %v36, 0
    %v84 = vsel %vm49, %v37, 0
    %v87 = vsel %vm49, %v38, 0
    %v90 = vsel %vm49, %v39, 0
    %v93 = vsel %vm49, %v40, 0
    %v96 = vsel %vm49, %v41, 0
    %98 = vmatpush.msra.mxu0 0.0
    %99 = vmatpush.msra.mxu0 0.0
    %100 = vmatpush.msra.mxu0 0.0
    %101 = vmatpush.msra.mxu0 0.0
    %102 = vmatpush.msra.mxu0 0.0
    %103 = vmatpush.msra.mxu0 0.0
    %104 = vmatpush.msra.mxu0 0.0
    %105 = vmatpush.msra.mxu0 0.0
    %106 = vmatpush.msra.mxu0 0.0
    %107 = vmatpush.msra.mxu0 0.0
    %108 = vmatpush.msra.mxu0 0.0
    %109 = vmatpush.msra.mxu0 0.0
    %110 = vmatpush.msra.mxu0 0.0
    %111 = vmatpush.msra.mxu0 %v44
    %112 = vmatpush.msra.mxu0 %v43
    %113 = vmatpush.msra.mxu0 %v42
    %114 = vmatmul.f32.gmra.mxu0 %v51
    %v115 = vpop.f32.mrf.mxu0
    %v116 = vadd.f32 %v47, %v115
    %117 = vmatmul.f32.gmra.mxu0 %v54
    %v118 = vpop.f32.mrf.mxu0
    %v119 = vadd.f32 %v47, %v118
    %120 = vmatmul.f32.gmra.mxu0 %v57
    %v121 = vpop.f32.mrf.mxu0
    %v122 = vadd.f32 %v47, %v121
    %123 = vmatmul.f32.gmra.mxu0 %v60
    %v124 = vpop.f32.mrf.mxu0
    %v125 = vadd.f32 %v47, %v124
    %126 = vmatmul.f32.gmra.mxu0 %v63
    %v127 = vpop.f32.mrf.mxu0
    %v128 = vadd.f32 %v47, %v127
    %129 = vmatmul.f32.gmra.mxu0 %v66
    %v130 = vpop.f32.mrf.mxu0
    %v131 = vadd.f32 %v47, %v130
    %132 = vmatmul.f32.gmra.mxu0 %v69
    %v133 = vpop.f32.mrf.mxu0
    %v134 = vadd.f32 %v47, %v133
    %135 = vmatmul.f32.gmra.mxu0 %v72
    %v136 = vpop.f32.mrf.mxu0
    %v137 = vadd.f32 %v47, %v136
    %138 = vmatmul.f32.gmra.mxu0 %v75
    %v139 = vpop.f32.mrf.mxu0
    %v140 = vadd.f32 %v47, %v139
    %141 = vmatmul.f32.gmra.mxu0 %v78
    %v142 = vpop.f32.mrf.mxu0
    %v143 = vadd.f32 %v47, %v142
    %144 = vmatmul.f32.gmra.mxu0 %v81
    %v145 = vpop.f32.mrf.mxu0
    %v146 = vadd.f32 %v47, %v145
    %147 = vmatmul.f32.gmra.mxu0 %v84
    %v148 = vpop.f32.mrf.mxu0
    %v149 = vadd.f32 %v47, %v148
    %150 = vmatmul.f32.gmra.mxu0 %v87
    %v151 = vpop.f32.mrf.mxu0
    %v152 = vadd.f32 %v47, %v151
    %153 = vmatmul.f32.gmra.mxu0 %v90
    %v154 = vpop.f32.mrf.mxu0
    %v155 = vadd.f32 %v47, %v154
    %156 = vmatmul.f32.gmra.mxu0 %v93
    %v157 = vpop.f32.mrf.mxu0
    %v158 = vadd.f32 %v47, %v157
    %159 = vmatmul.f32.gmra.mxu0 %v96
    %v160 = vpop.f32.mrf.mxu0
    %v161 = vadd.f32 %v47, %v160
    %162 = vdwg.mxu0
    %163 = vst [vmem:[#allocation2] sm:$0xff] %v116
    %164 = vst [vmem:[#allocation2 + $0x8] sm:$0xff] %v119
    %165 = vst [vmem:[#allocation2 + $0x10] sm:$0xff] %v122
    %166 = vst [vmem:[#allocation2 + $0x18] sm:$0xff] %v125
    %167 = vst [vmem:[#allocation2 + $0x20] sm:$0xff] %v128
    %168 = vst [vmem:[#allocation2 + $0x28] sm:$0xff] %v131
    %169 = vst [vmem:[#allocation2 + $0x30] sm:$0xff] %v134
    %170 = vst [vmem:[#allocation2 + $0x38] sm:$0xff] %v137
    %171 = vst [vmem:[#allocation2 + $0x40] sm:$0xff] %v140
    %172 = vst [vmem:[#allocation2 + $0x48] sm:$0xff] %v143
    %173 = vst [vmem:[#allocation2 + $0x50] sm:$0xff] %v146
    %174 = vst [vmem:[#allocation2 + $0x58] sm:$0xff] %v149
    %175 = vst [vmem:[#allocation2 + $0x60] sm:$0xff] %v152
    %176 = vst [vmem:[#allocation2 + $0x68] sm:$0xff] %v155
    %177 = vst [vmem:[#allocation2 + $0x70] sm:$0xff] %v158
    %178 = vst [vmem:[#allocation2 + $0x78] sm:$0xff] %v161
    %v179 = vpack.c.bf16 %v116, %v116
    %v180 = vpack.c.bf16 %v119, %v119
    %v181 = vpack.c.bf16 %v122, %v122
    %v182 = vpack.c.bf16 %v125, %v125
    %v183 = vpack.c.bf16 %v128, %v128
    %v184 = vpack.c.bf16 %v131, %v131
    %v185 = vpack.c.bf16 %v134, %v134
    %v186 = vpack.c.bf16 %v137, %v137
    %v187 = vpack.c.bf16 %v140, %v140
    %v188 = vpack.c.bf16 %v143, %v143
    %v189 = vpack.c.bf16 %v146, %v146
    %v190 = vpack.c.bf16 %v149, %v149
    %v191 = vpack.c.bf16 %v152, %v152
    %v192 = vpack.c.bf16 %v155, %v155
    %v193 = vpack.c.bf16 %v158, %v158
    %v194 = vpack.c.bf16 %v161, %v161
    %195 = vst [vmem:[#allocation4] sm:$0xf] %v179
    %196 = vst [vmem:[#allocation4 + $0x4] sm:$0xf] %v180
    %197 = vst [vmem:[#allocation4 + $0x8] sm:$0xf] %v181
    %198 = vst [vmem:[#allocation4 + $0xc] sm:$0xf] %v182
    %199 = vst [vmem:[#allocation4 + $0x10] sm:$0xf] %v183
    %200 = vst [vmem:[#allocation4 + $0x14] sm:$0xf] %v184
    %201 = vst [vmem:[#allocation4 + $0x18] sm:$0xf] %v185
    %202 = vst [vmem:[#allocation4 + $0x1c] sm:$0xf] %v186
    %203 = vst [vmem:[#allocation4 + $0x20] sm:$0xf] %v187
    %204 = vst [vmem:[#allocation4 + $0x24] sm:$0xf] %v188
    %205 = vst [vmem:[#allocation4 + $0x28] sm:$0xf] %v189
    %206 = vst [vmem:[#allocation4 + $0x2c] sm:$0xf] %v190
    %207 = vst [vmem:[#allocation4 + $0x30] sm:$0xf] %v191
    %208 = vst [vmem:[#allocation4 + $0x34] sm:$0xf] %v192
    %209 = vst [vmem:[#allocation4 + $0x38] sm:$0xf] %v193
    %210 = vst [vmem:[#allocation4 + $0x3c] sm:$0xf] %v194
    %v211 = vld [vmem:[%s3] sm:$0xff]
    %v212 = vld [vmem:[%s3 + $0x8] sm:$0xff]
    %v213 = vld [vmem:[%s3 + $0x10] sm:$0xff]
    %v214 = vld [vmem:[%s3 + $0x18] sm:$0xff]
    %v215 = vld [vmem:[%s3 + $0x20] sm:$0xff]
    %v216 = vld [vmem:[%s3 + $0x28] sm:$0xff]
    %v217 = vld [vmem:[%s3 + $0x30] sm:$0xff]
    %v218 = vld [vmem:[%s3 + $0x38] sm:$0xff]
    %v219 = vld [vmem:[%s3 + $0x40] sm:$0xff]
    %v220 = vld [vmem:[%s3 + $0x48] sm:$0xff]
    %v221 = vld [vmem:[%s3 + $0x50] sm:$0xff]
    %v222 = vld [vmem:[%s3 + $0x58] sm:$0xff]
    %v223 = vld [vmem:[%s3 + $0x60] sm:$0xff]
    %v224 = vld [vmem:[%s3 + $0x68] sm:$0xff]
    %v225 = vld [vmem:[%s3 + $0x70] sm:$0xff]
    %v226 = vld [vmem:[%s3 + $0x78] sm:$0xff]
    %227 = vmatpush.msra.mxu0 %v226
    %228 = vmatpush.msra.mxu0 %v225
    %229 = vmatpush.msra.mxu0 %v224
    %230 = vmatpush.msra.mxu0 %v223
    %231 = vmatpush.msra.mxu0 %v222
    %232 = vmatpush.msra.mxu0 %v221
    %233 = vmatpush.msra.mxu0 %v220
    %234 = vmatpush.msra.mxu0 %v219
    %235 = vmatpush.msra.mxu0 %v218
    %236 = vmatpush.msra.mxu0 %v217
    %237 = vmatpush.msra.mxu0 %v216
    %238 = vmatpush.msra.mxu0 %v215
    %239 = vmatpush.msra.mxu0 %v214
    %240 = vmatpush.msra.mxu0 %v213
    %241 = vmatpush.msra.mxu0 %v212
    %242 = vmatpush.msra.mxu0 %v211
    %243 = vmatmul.f32.gmra.mxu0 %v116
    %v244 = vpop.f32.mrf.mxu0
    %v245 = vadd.f32 0.0, %v244
    %246 = vmatmul.f32.gmra.mxu0 %v119
    %v247 = vpop.f32.mrf.mxu0
    %v248 = vadd.f32 0.0, %v247
    %249 = vmatmul.f32.gmra.mxu0 %v122
    %v250 = vpop.f32.mrf.mxu0
    %v251 = vadd.f32 0.0, %v250
    %252 = vmatmul.f32.gmra.mxu0 %v125
    %v253 = vpop.f32.mrf.mxu0
    %v254 = vadd.f32 0.0, %v253
    %255 = vmatmul.f32.gmra.mxu0 %v128
    %v256 = vpop.f32.mrf.mxu0
    %v257 = vadd.f32 0.0, %v256
    %258 = vmatmul.f32.gmra.mxu0 %v131
    %v259 = vpop.f32.mrf.mxu0
    %v260 = vadd.f32 0.0, %v259
    %261 = vmatmul.f32.gmra.mxu0 %v134
    %v262 = vpop.f32.mrf.mxu0
    %v263 = vadd.f32 0.0, %v262
    %264 = vmatmul.f32.gmra.mxu0 %v137
    %v265 = vpop.f32.mrf.mxu0
    %v266 = vadd.f32 0.0, %v265
    %267 = vmatmul.f32.gmra.mxu0 %v140
    %v268 = vpop.f32.mrf.mxu0
    %v269 = vadd.f32 0.0, %v268
    %270 = vmatmul.f32.gmra.mxu0 %v143
    %v271 = vpop.f32.mrf.mxu0
    %v272 = vadd.f32 0.0, %v271
    %273 = vmatmul.f32.gmra.mxu0 %v146
    %v274 = vpop.f32.mrf.mxu0
    %v275 = vadd.f32 0.0, %v274
    %276 = vmatmul.f32.gmra.mxu0 %v149
    %v277 = vpop.f32.mrf.mxu0
    %v278 = vadd.f32 0.0, %v277
    %279 = vmatmul.f32.gmra.mxu0 %v152
    %v280 = vpop.f32.mrf.mxu0
    %v281 = vadd.f32 0.0, %v280
    %282 = vmatmul.f32.gmra.mxu0 %v155
    %v283 = vpop.f32.mrf.mxu0
    %v284 = vadd.f32 0.0, %v283
    %285 = vmatmul.f32.gmra.mxu0 %v158
    %v286 = vpop.f32.mrf.mxu0
    %v287 = vadd.f32 0.0, %v286
    %288 = vmatmul.f32.gmra.mxu0 %v161
    %v289 = vpop.f32.mrf.mxu0
    %v290 = vadd.f32 0.0, %v289
    %291 = vdwg.mxu0
    %vm292 = vcmask 31744
    %293 = vst.msk [vmem:[%s7] sm:$0xff] %vm292, %v245
    %294 = vst.msk [vmem:[%s7 + $0x8] sm:$0xff] %vm292, %v248
    %295 = vst.msk [vmem:[%s7 + $0x10] sm:$0xff] %vm292, %v251
    %296 = vst.msk [vmem:[%s7 + $0x18] sm:$0xff] %vm292, %v254
    %297 = vst.msk [vmem:[%s7 + $0x20] sm:$0xff] %vm292, %v257
    %298 = vst.msk [vmem:[%s7 + $0x28] sm:$0xff] %vm292, %v260
    %299 = vst.msk [vmem:[%s7 + $0x30] sm:$0xff] %vm292, %v263
    %300 = vst.msk [vmem:[%s7 + $0x38] sm:$0xff] %vm292, %v266
    %301 = vst.msk [vmem:[%s7 + $0x40] sm:$0xff] %vm292, %v269
    %302 = vst.msk [vmem:[%s7 + $0x48] sm:$0xff] %vm292, %v272
    %303 = vst.msk [vmem:[%s7 + $0x50] sm:$0xff] %vm292, %v275
    %304 = vst.msk [vmem:[%s7 + $0x58] sm:$0xff] %vm292, %v278
    %305 = vst.msk [vmem:[%s7 + $0x60] sm:$0xff] %vm292, %v281
    %306 = vst.msk [vmem:[%s7 + $0x68] sm:$0xff] %vm292, %v284
    %307 = vst.msk [vmem:[%s7 + $0x70] sm:$0xff] %vm292, %v287
    %308 = vst.msk [vmem:[%s7 + $0x78] sm:$0xff] %vm292, %v290
    %v309 = vld [vmem:[%s4] sm:$0xff]
    %v310 = vld [vmem:[%s4 + $0x8] sm:$0xff]
    %v311 = vld [vmem:[%s4 + $0x10] sm:$0xff]
    %v312 = vld [vmem:[%s4 + $0x18] sm:$0xff]
    %v313 = vld [vmem:[%s4 + $0x20] sm:$0xff]
    %v314 = vld [vmem:[%s4 + $0x28] sm:$0xff]
    %v315 = vld [vmem:[%s4 + $0x30] sm:$0xff]
    %v316 = vld [vmem:[%s4 + $0x38] sm:$0xff]
    %v317 = vld [vmem:[%s4 + $0x40] sm:$0xff]
    %v318 = vld [vmem:[%s4 + $0x48] sm:$0xff]
    %v319 = vld [vmem:[%s4 + $0x50] sm:$0xff]
    %v320 = vld [vmem:[%s4 + $0x58] sm:$0xff]
    %v321 = vld [vmem:[%s4 + $0x60] sm:$0xff]
    %v322 = vld [vmem:[%s4 + $0x68] sm:$0xff]
    %v323 = vld [vmem:[%s4 + $0x70] sm:$0xff]
    %v324 = vld [vmem:[%s4 + $0x78] sm:$0xff]
    %325 = vmatpush.msra.mxu0 %v324
    %326 = vmatpush.msra.mxu0 %v323
    %327 = vmatpush.msra.mxu0 %v322
    %328 = vmatpush.msra.mxu0 %v321
    %329 = vmatpush.msra.mxu0 %v320
    %330 = vmatpush.msra.mxu0 %v319
    %331 = vmatpush.msra.mxu0 %v318
    %332 = vmatpush.msra.mxu0 %v317
    %333 = vmatpush.msra.mxu0 %v316
    %334 = vmatpush.msra.mxu0 %v315
    %335 = vmatpush.msra.mxu0 %v314
    %336 = vmatpush.msra.mxu0 %v313
    %337 = vmatpush.msra.mxu0 %v312
    %338 = vmatpush.msra.mxu0 %v311
    %339 = vmatpush.msra.mxu0 %v310
    %340 = vmatpush.msra.mxu0 %v309
    %341 = vmatmul.f32.gmra.mxu0 %v116
    %v342 = vpop.f32.mrf.mxu0
    %v343 = vadd.f32 0.0, %v342
    %344 = vmatmul.f32.gmra.mxu0 %v119
    %v345 = vpop.f32.mrf.mxu0
    %v346 = vadd.f32 0.0, %v345
    %347 = vmatmul.f32.gmra.mxu0 %v122
    %v348 = vpop.f32.mrf.mxu0
    %v349 = vadd.f32 0.0, %v348
    %350 = vmatmul.f32.gmra.mxu0 %v125
    %v351 = vpop.f32.mrf.mxu0
    %v352 = vadd.f32 0.0, %v351
    %353 = vmatmul.f32.gmra.mxu0 %v128
    %v354 = vpop.f32.mrf.mxu0
    %v355 = vadd.f32 0.0, %v354
    %356 = vmatmul.f32.gmra.mxu0 %v131
    %v357 = vpop.f32.mrf.mxu0
    %v358 = vadd.f32 0.0, %v357
    %359 = vmatmul.f32.gmra.mxu0 %v134
    %v360 = vpop.f32.mrf.mxu0
    %v361 = vadd.f32 0.0, %v360
    %362 = vmatmul.f32.gmra.mxu0 %v137
    %v363 = vpop.f32.mrf.mxu0
    %v364 = vadd.f32 0.0, %v363
    %365 = vmatmul.f32.gmra.mxu0 %v140
    %v366 = vpop.f32.mrf.mxu0
    %v367 = vadd.f32 0.0, %v366
    %368 = vmatmul.f32.gmra.mxu0 %v143
    %v369 = vpop.f32.mrf.mxu0
    %v370 = vadd.f32 0.0, %v369
    %371 = vmatmul.f32.gmra.mxu0 %v146
    %v372 = vpop.f32.mrf.mxu0
    %v373 = vadd.f32 0.0, %v372
    %374 = vmatmul.f32.gmra.mxu0 %v149
    %v375 = vpop.f32.mrf.mxu0
    %v376 = vadd.f32 0.0, %v375
    %377 = vmatmul.f32.gmra.mxu0 %v152
    %v378 = vpop.f32.mrf.mxu0
    %v379 = vadd.f32 0.0, %v378
    %380 = vmatmul.f32.gmra.mxu0 %v155
    %v381 = vpop.f32.mrf.mxu0
    %v382 = vadd.f32 0.0, %v381
    %383 = vmatmul.f32.gmra.mxu0 %v158
    %v384 = vpop.f32.mrf.mxu0
    %v385 = vadd.f32 0.0, %v384
    %386 = vmatmul.f32.gmra.mxu0 %v161
    %v387 = vpop.f32.mrf.mxu0
    %v388 = vadd.f32 0.0, %v387
    %389 = vdwg.mxu0
    %390 = vst.msk [vmem:[%s8] sm:$0xff] %vm292, %v343
    %391 = vst.msk [vmem:[%s8 + $0x8] sm:$0xff] %vm292, %v346
    %392 = vst.msk [vmem:[%s8 + $0x10] sm:$0xff] %vm292, %v349
    %393 = vst.msk [vmem:[%s8 + $0x18] sm:$0xff] %vm292, %v352
    %394 = vst.msk [vmem:[%s8 + $0x20] sm:$0xff] %vm292, %v355
    %395 = vst.msk [vmem:[%s8 + $0x28] sm:$0xff] %vm292, %v358
    %396 = vst.msk [vmem:[%s8 + $0x30] sm:$0xff] %vm292, %v361
    %397 = vst.msk [vmem:[%s8 + $0x38] sm:$0xff] %vm292, %v364
    %398 = vst.msk [vmem:[%s8 + $0x40] sm:$0xff] %vm292, %v367
    %399 = vst.msk [vmem:[%s8 + $0x48] sm:$0xff] %vm292, %v370
    %400 = vst.msk [vmem:[%s8 + $0x50] sm:$0xff] %vm292, %v373
    %401 = vst.msk [vmem:[%s8 + $0x58] sm:$0xff] %vm292, %v376
    %402 = vst.msk [vmem:[%s8 + $0x60] sm:$0xff] %vm292, %v379
    %403 = vst.msk [vmem:[%s8 + $0x68] sm:$0xff] %vm292, %v382
    %404 = vst.msk [vmem:[%s8 + $0x70] sm:$0xff] %vm292, %v385
    %405 = vst.msk [vmem:[%s8 + $0x78] sm:$0xff] %vm292, %v388
    // Predicated region
    $region22: #{tpu_custom_call.1} parent=1 // pred_check
      _
    $region23: #{tpu_custom_call.1} parent=1 // pred_check_branch
      %407 = sbr.rel (0) target = $region25
    $region24: #{tpu_custom_call.1} parent=1 // pred_region
      %409 = vsyncadd [#allocation3], 0
      %s410 = sshll.u32 [#allocation2], 4
      %s411 = int_to_ptr.vmem [resolvable:$true] %s410
      %s412 = sshll.u32 %s5, 4
      %s413 = int_to_ptr.hbm [resolvable:$true] %s412
      %418 = dma.vmem_to_hbm [thread:$0]  %s411, 2048, %s413, [#allocation3], 128, 128, 8
    $region25: #{tpu_custom_call.1} parent=1 // pred_fallthru
      _
    // Predicated region
    $region26: #{tpu_custom_call.1} parent=1 // pred_check
      _
    $region27: #{tpu_custom_call.1} parent=1 // pred_check_branch
      %420 = sbr.rel (0) target = $region29
    $region28: #{tpu_custom_call.1} parent=1 // pred_region
      %422 = vsyncadd [#allocation5], 0
      %s423 = sshll.u32 [#allocation4], 4
      %s424 = int_to_ptr.vmem [resolvable:$true] %s423
      %s425 = sshll.u32 %s6, 4
      %s426 = int_to_ptr.hbm [resolvable:$true] %s425
      %431 = dma.vmem_to_hbm [thread:$0]  %s424, 1024, %s426, [#allocation5], 64, 64, 4
    $region29: #{tpu_custom_call.1} parent=1 // pred_fallthru
      _
    // Predicated region
    $region30: #{tpu_custom_call.1} parent=1 // pred_check
      _
    $region31: #{tpu_custom_call.1} parent=1 // pred_check_branch
      %433 = sbr.rel (0) target = $region33
    $region32: #{tpu_custom_call.1} parent=1 // pred_region
      _
    $region33: #{tpu_custom_call.1} parent=1 // pred_fallthru
      _
    // Predicated region
    $region34: #{tpu_custom_call.1} parent=1 // pred_check
      _
    $region35: #{tpu_custom_call.1} parent=1 // pred_check_branch
      %435 = sbr.rel (0) target = $region37
    $region36: #{tpu_custom_call.1} parent=1 // pred_region
      _
    $region37: #{tpu_custom_call.1} parent=1 // pred_fallthru
      _
    // Predicated region
    $region38: #{tpu_custom_call.1} parent=1 // pred_check
      _
    $region39: #{tpu_custom_call.1} parent=1 // pred_check_branch
      %437 = sbr.rel (0) target = $region41
    $region40: #{tpu_custom_call.1} parent=1 // pred_region
      %439 = dma.done [#allocation3], 2048
    $region41: #{tpu_custom_call.1} parent=1 // pred_fallthru
      _
    // Predicated region
    $region42: #{tpu_custom_call.1} parent=1 // pred_check
      _
    $region43: #{tpu_custom_call.1} parent=1 // pred_check_branch
      %441 = sbr.rel (0) target = $region45
    $region44: #{tpu_custom_call.1} parent=1 // pred_region
      %443 = dma.done [#allocation5], 1024
    $region45: #{tpu_custom_call.1} parent=1 // pred_fallthru
      _
    // Predicated region
    $region46: #{tpu_custom_call.1} parent=1 // pred_check
      _
    $region47: #{tpu_custom_call.1} parent=1 // pred_check_branch
      %445 = sbr.rel (0) target = $region49
    $region48: #{tpu_custom_call.1} parent=1 // pred_region
      _
    $region49: #{tpu_custom_call.1} parent=1 // pred_fallthru
      _
    // Predicated region
    $region50: #{tpu_custom_call.1} parent=1 // pred_check
      _
    $region51: #{tpu_custom_call.1} parent=1 // pred_check_branch
      %447 = sbr.rel (0) target = $region53
    $region52: #{tpu_custom_call.1} parent=1 // pred_region
      _
    $region53: #{tpu_custom_call.1} parent=1 // pred_fallthru
      _
    %448 = vsyncpa [#allocation3], 1
    %449 = vsyncpa [#allocation5], 1

</llo_original>
